<compile_context>
chip_gen: v7x
topology: tpu7x:2x2x1
jax: 0.10.0
libtpu: 0.0.40
codegen_flags: <defaults>
</compile_context>

<pallas_src>
import functools

import jax
import jax.numpy as jnp
from jax.experimental import pallas as pl
from jax.experimental.pallas import tpu as pltpu


def attention_kernel(enc_ref, dec_ref, ua_w_ref, ua_b_ref,
                     wa_w_ref, wa_b_ref, v_ref, out_ref, *, src_len):
    """One batch tile: enc_ref (TB*S, 2H) bf16, dec_ref (TB, H) bf16 -> out_ref (TB, S) f32."""
    S = src_len
    TB = dec_ref.shape[0]
    U = ua_w_ref.shape[1]

    # Two projections on the MXU (bf16 operands, f32 accumulation).
    enc_proj = jnp.dot(enc_ref[...], ua_w_ref[...],
                       preferred_element_type=jnp.float32) + ua_b_ref[...]     # (TB*S, U) f32
    dec_proj = jnp.dot(dec_ref[...], wa_w_ref[...],
                       preferred_element_type=jnp.float32) + wa_b_ref[...]     # (TB, U)   f32

    # Broadcast the decoder projection over src_len (cheap sublane broadcast), tanh on EUP.
    energy = jnp.tanh(enc_proj.reshape(TB, S, U) + dec_proj[:, None, :])       # (TB, S, U) f32

    # v-reduction over U (lane axis). Result is already (TB, S) -> no transpose/relayout.
    scores = jnp.sum(energy * v_ref[...], axis=-1)                             # (TB, S)

    # Row softmax over src_len (lane axis). Exact divide so every row sums to 1
    # to f32 rounding (approx reciprocal broke the sum-to-1 property at 1e-3).
    m = jnp.max(scores, axis=-1, keepdims=True)
    e = jnp.exp(scores - m)
    denom = jnp.sum(e, axis=-1, keepdims=True)
    out_ref[...] = e / denom


def attention_forward(encoder_hiddens, last_dec_hidden,
                      ua_w, ua_b, wa_w, wa_b, v_w, *, batch_tile=8):
    """encoder_hiddens: (S, B, 2H) f32, last_dec_hidden: (B, H) f32 -> (B, S) f32."""
    S, B, H2 = encoder_hiddens.shape
    H = last_dec_hidden.shape[1]
    U = ua_w.shape[1]

    # Wrapper-side layout plumbing (free in XLA relative to the kernel):
    #   (S, B, 2H) -> (B, S, 2H) -> (B*S, 2H), plus bf16 cast of the MXU operands.
    enc_flat = (encoder_hiddens.transpose(1, 0, 2)
                .reshape(B * S, H2).astype(jnp.bfloat16))
    dec = last_dec_hidden.astype(jnp.bfloat16)
    ua_w_b = ua_w.astype(jnp.bfloat16)
    wa_w_b = wa_w.astype(jnp.bfloat16)

    # Batch rows per grid step (grid amortizes launch/pipeline overhead).
    tb = batch_tile if (B % batch_tile == 0) else B
    grid = (B // tb,)

    kernel = functools.partial(attention_kernel, src_len=S)
    # TODO(synk): for very large src_len, add an S grid axis + online-softmax scratch
    # instead of loading the full (tb*S, 2H) encoder block per step.
    return pl.pallas_call(
        kernel,
        out_shape=jax.ShapeDtypeStruct((B, S), jnp.float32),
        grid_spec=pltpu.PrefetchScalarGridSpec(
            num_scalar_prefetch=0,
            grid=grid,
            in_specs=[
                pl.BlockSpec((tb * S, H2), lambda i: (i, 0)),   # encoder rows for this batch tile
                pl.BlockSpec((tb, H), lambda i: (i, 0)),        # decoder rows
                pl.BlockSpec((H2, U), lambda i: (0, 0)),        # Ua weight (resident)
                pl.BlockSpec((1, U), lambda i: (0, 0)),         # Ua bias
                pl.BlockSpec((H, U), lambda i: (0, 0)),         # Wa weight (resident)
                pl.BlockSpec((1, U), lambda i: (0, 0)),         # Wa bias
                pl.BlockSpec((1, U), lambda i: (0, 0)),         # v
            ],
            out_specs=pl.BlockSpec((tb, S), lambda i: (i, 0)),
        ),
        compiler_params=pltpu.CompilerParams(
            dimension_semantics=("parallel",)),   # shard batch tiles across TensorCores
    )(enc_flat, dec, ua_w_b, ua_b, wa_w_b, wa_b, v_w)


def attention_ref(encoder_hiddens, last_dec_hidden,
                  ua_w, ua_b, wa_w, wa_b, v_w):
    """Pure-JAX f32 reference matching the PyTorch forward pass."""
    enc_proj = jnp.einsum('sbh,hu->sbu', encoder_hiddens, ua_w) + ua_b[0]
    dec_proj = last_dec_hidden @ wa_w + wa_b[0]          # (B, U)
    energy = jnp.tanh(enc_proj + dec_proj[None, :, :])   # (S, B, U)
    attn = jnp.einsum('sbu,u->sb', energy, v_w[0]).T     # (B, S)
    return jax.nn.softmax(attn, axis=1)


if __name__ == "__main__":
    # Small shapes consistent with the module's forward; batch=16 gives a grid of
    # two "parallel" batch tiles to demonstrate the amortized/sharded launch.
    hidden_size = 16
    hidden_unit = 32
    batch = 16
    src_len = 8

    key = jax.random.PRNGKey(0)
    k_enc, k_dec, k_ua, k_uab, k_wa, k_wab, k_v = jax.random.split(key, 7)

    encoder_hiddens = jax.random.normal(
        k_enc, (src_len, batch, 2 * hidden_size), dtype=jnp.float32)
    last_dec_hidden = jax.random.normal(
        k_dec, (batch, hidden_size), dtype=jnp.float32)

    # Parameters follow nn.Linear shapes, stored transposed as (in, out); biases (1, out).
    ua_w = 0.05 * jax.random.normal(k_ua, (2 * hidden_size, hidden_unit), jnp.float32)
    ua_b = 0.05 * jax.random.normal(k_uab, (1, hidden_unit), jnp.float32)
    wa_w = 0.05 * jax.random.normal(k_wa, (hidden_size, hidden_unit), jnp.float32)
    wa_b = 0.05 * jax.random.normal(k_wab, (1, hidden_unit), jnp.float32)
    v_w = 0.05 * jax.random.normal(k_v, (1, hidden_unit), jnp.float32)

    out = attention_forward(encoder_hiddens, last_dec_hidden,
                            ua_w, ua_b, wa_w, wa_b, v_w)
    out = jax.block_until_ready(out)

    ref = attention_ref(encoder_hiddens, last_dec_hidden,
                        ua_w, ua_b, wa_w, wa_b, v_w)

    assert out.shape == (batch, src_len), out.shape
    # bf16 MXU operands -> small score perturbation; softmax output agrees to ~1e-3.
    assert jnp.allclose(out, ref, atol=3e-3, rtol=3e-3), (out, ref)
    # Exact divide in the softmax -> rows sum to 1 to f32 rounding.
    assert jnp.allclose(jnp.sum(out, axis=1), 1.0, atol=1e-3)

    print("KERNEL_OK")
</pallas_src>

<mosaic_0001>
module attributes {stable_mosaic.version = 11 : i64} {
  func.func @attention_kernel(%arg0: i32, %arg1: memref<64x32xbf16, #tpu.memory_space<vmem>>, %arg2: memref<8x16xbf16, #tpu.memory_space<vmem>>, %arg3: memref<32x32xbf16, #tpu.memory_space<vmem>>, %arg4: memref<1x32xf32, #tpu.memory_space<vmem>>, %arg5: memref<16x32xbf16, #tpu.memory_space<vmem>>, %arg6: memref<1x32xf32, #tpu.memory_space<vmem>>, %arg7: memref<1x32xf32, #tpu.memory_space<vmem>>, %arg8: memref<8x8xf32, #tpu.memory_space<vmem>>) attributes {dimension_semantics = [#tpu.dimension_semantics<parallel>], iteration_bounds = array<i64: 2>, scalar_prefetch = 0 : i64, scratch_operands = 0 : i64, tpu.core_type = #tpu.core_type<tc>, window_params = [{transform_indices = @transform_0, window_bounds = array<i64: 64, 32>}, {transform_indices = @transform_1, window_bounds = array<i64: 8, 16>}, {pipeline_mode = #tpu.pipeline_mode<synchronous>, transform_indices = @transform_2, window_bounds = array<i64: 32, 32>}, {pipeline_mode = #tpu.pipeline_mode<synchronous>, transform_indices = @transform_3, window_bounds = array<i64: 1, 32>}, {pipeline_mode = #tpu.pipeline_mode<synchronous>, transform_indices = @transform_4, window_bounds = array<i64: 16, 32>}, {pipeline_mode = #tpu.pipeline_mode<synchronous>, transform_indices = @transform_5, window_bounds = array<i64: 1, 32>}, {pipeline_mode = #tpu.pipeline_mode<synchronous>, transform_indices = @transform_6, window_bounds = array<i64: 1, 32>}, {transform_indices = @transform_7, window_bounds = array<i64: 8, 8>}]} {
    %c0 = arith.constant 0 : index
    %c0_0 = arith.constant 0 : index
    %0 = vector.load %arg1[%c0, %c0_0] : memref<64x32xbf16, #tpu.memory_space<vmem>>, vector<64x32xbf16>
    %c0_1 = arith.constant 0 : index
    %c0_2 = arith.constant 0 : index
    %1 = vector.load %arg3[%c0_1, %c0_2] : memref<32x32xbf16, #tpu.memory_space<vmem>>, vector<32x32xbf16>
    %cst = arith.constant dense<0.000000e+00> : vector<64x32xf32>
    %2 = tpu.matmul %0, %1, %cst {dimension_numbers = #tpu.dot_dimension_numbers<[1], [0], [0], [1], [0, 0, 1, 1], [], []>} : vector<64x32xbf16>, vector<32x32xbf16>, vector<64x32xf32> -> vector<64x32xf32>
    %c0_3 = arith.constant 0 : index
    %c0_4 = arith.constant 0 : index
    %3 = vector.load %arg4[%c0_3, %c0_4] : memref<1x32xf32, #tpu.memory_space<vmem>>, vector<1x32xf32>
    %4 = vector.broadcast %3 : vector<1x32xf32> to vector<64x32xf32>
    %5 = arith.addf %2, %4 : vector<64x32xf32>
    %c0_5 = arith.constant 0 : index
    %c0_6 = arith.constant 0 : index
    %6 = vector.load %arg2[%c0_5, %c0_6] : memref<8x16xbf16, #tpu.memory_space<vmem>>, vector<8x16xbf16>
    %c0_7 = arith.constant 0 : index
    %c0_8 = arith.constant 0 : index
    %7 = vector.load %arg5[%c0_7, %c0_8] : memref<16x32xbf16, #tpu.memory_space<vmem>>, vector<16x32xbf16>
    %cst_9 = arith.constant dense<0.000000e+00> : vector<8x32xf32>
    %8 = tpu.matmul %6, %7, %cst_9 {dimension_numbers = #tpu.dot_dimension_numbers<[1], [0], [0], [1], [0, 0, 1, 1], [], []>} : vector<8x16xbf16>, vector<16x32xbf16>, vector<8x32xf32> -> vector<8x32xf32>
    %c0_10 = arith.constant 0 : index
    %c0_11 = arith.constant 0 : index
    %9 = vector.load %arg6[%c0_10, %c0_11] : memref<1x32xf32, #tpu.memory_space<vmem>>, vector<1x32xf32>
    %10 = vector.broadcast %9 : vector<1x32xf32> to vector<8x32xf32>
    %11 = arith.addf %8, %10 : vector<8x32xf32>
    %12 = vector.shape_cast %5 : vector<64x32xf32> to vector<8x8x32xf32>
    %13 = vector.shape_cast %11 : vector<8x32xf32> to vector<8x1x32xf32>
    %14 = vector.broadcast %13 : vector<8x1x32xf32> to vector<8x8x32xf32>
    %15 = arith.addf %12, %14 : vector<8x8x32xf32>
    %16 = math.tanh %15 : vector<8x8x32xf32>
    %c0_12 = arith.constant 0 : index
    %c0_13 = arith.constant 0 : index
    %17 = vector.load %arg7[%c0_12, %c0_13] : memref<1x32xf32, #tpu.memory_space<vmem>>, vector<1x32xf32>
    %18 = vector.shape_cast %17 : vector<1x32xf32> to vector<1x1x32xf32>
    %19 = vector.broadcast %18 : vector<1x1x32xf32> to vector<8x8x32xf32>
    %20 = arith.mulf %16, %19 : vector<8x8x32xf32>
    %cst_14 = arith.constant dense<0.000000e+00> : vector<8x8xf32>
    %21 = vector.multi_reduction <add>, %20, %cst_14 [2] : vector<8x8x32xf32> to vector<8x8xf32>
    %cst_15 = arith.constant dense<0xFF800000> : vector<8xf32>
    %22 = vector.multi_reduction <maximumf>, %21, %cst_15 [1] : vector<8x8xf32> to vector<8xf32>
    %23 = vector.shape_cast %22 : vector<8xf32> to vector<8x1xf32>
    %24 = vector.broadcast %23 : vector<8x1xf32> to vector<8x8xf32>
    %25 = arith.subf %21, %24 : vector<8x8xf32>
    %26 = math.exp %25 : vector<8x8xf32>
    %cst_16 = arith.constant dense<0.000000e+00> : vector<8xf32>
    %27 = vector.multi_reduction <add>, %26, %cst_16 [1] : vector<8x8xf32> to vector<8xf32>
    %28 = vector.shape_cast %27 : vector<8xf32> to vector<8x1xf32>
    %29 = vector.broadcast %28 : vector<8x1xf32> to vector<8x8xf32>
    %30 = arith.divf %26, %29 : vector<8x8xf32>
    %c0_17 = arith.constant 0 : index
    %c0_18 = arith.constant 0 : index
    %31 = vector.load %arg8[%c0_17, %c0_18] : memref<8x8xf32, #tpu.memory_space<vmem>>, vector<8x8xf32>
    tpu.vector_store %arg8[%c0_17, %c0_18], %30 {strides = array<i32>} : memref<8x8xf32, #tpu.memory_space<vmem>>, vector<8x8xf32>,
    return
  }
  func.func @transform_0(%arg0: i32) -> (i32, i32) {
    %c0_i32 = arith.constant 0 : i32
    %c0_i32_0 = arith.constant 0 : i32
    return %arg0, %c0_i32 : i32, i32
  }
  func.func @transform_1(%arg0: i32) -> (i32, i32) {
    %c0_i32 = arith.constant 0 : i32
    %c0_i32_0 = arith.constant 0 : i32
    return %arg0, %c0_i32 : i32, i32
  }
  func.func @transform_2(%arg0: i32) -> (i32, i32) {
    %c0_i32 = arith.constant 0 : i32
    %c0_i32_0 = arith.constant 0 : i32
    %c0_i32_1 = arith.constant 0 : i32
    return %c0_i32, %c0_i32_0 : i32, i32
  }
  func.func @transform_3(%arg0: i32) -> (i32, i32) {
    %c0_i32 = arith.constant 0 : i32
    %c0_i32_0 = arith.constant 0 : i32
    %c0_i32_1 = arith.constant 0 : i32
    return %c0_i32, %c0_i32_0 : i32, i32
  }
  func.func @transform_4(%arg0: i32) -> (i32, i32) {
    %c0_i32 = arith.constant 0 : i32
    %c0_i32_0 = arith.constant 0 : i32
    %c0_i32_1 = arith.constant 0 : i32
    return %c0_i32, %c0_i32_0 : i32, i32
  }
  func.func @transform_5(%arg0: i32) -> (i32, i32) {
    %c0_i32 = arith.constant 0 : i32
    %c0_i32_0 = arith.constant 0 : i32
    %c0_i32_1 = arith.constant 0 : i32
    return %c0_i32, %c0_i32_0 : i32, i32
  }
  func.func @transform_6(%arg0: i32) -> (i32, i32) {
    %c0_i32 = arith.constant 0 : i32
    %c0_i32_0 = arith.constant 0 : i32
    %c0_i32_1 = arith.constant 0 : i32
    return %c0_i32, %c0_i32_0 : i32, i32
  }
  func.func @transform_7(%arg0: i32) -> (i32, i32) {
    %c0_i32 = arith.constant 0 : i32
    %c0_i32_0 = arith.constant 0 : i32
    return %arg0, %c0_i32 : i32, i32
  }
}

</mosaic_0001>

<llo_original>
// kernel: tpu_custom_call.1
$region0: #{tpu_custom_call.1}
  #allocation0 [shape = 'u32[]', space=smem, size = 0x4, offset = 0x4, fixed_abs, tag = 'smem constant byte address 0x4 - core index']
  #allocation1 [shape = 'u32[144,128]{1,0:T(1,128)}', space=vmem, size = 0x12000, scoped, tag = 'internal scratch']
  %s0 = inlined_call_operand.vmem [shape: bf16[128,32], index: 0, kind: input, shape index: {}]
  %s1 = inlined_call_operand.vmem [shape: bf16[16,16], index: 1, kind: input, shape index: {}]
  %s2 = inlined_call_operand.vmem [shape: bf16[32,32], index: 2, kind: input, shape index: {}]
  %s3 = inlined_call_operand.vmem [shape: f32[1,32], index: 3, kind: input, shape index: {}]
  %s4 = inlined_call_operand.vmem [shape: bf16[16,32], index: 4, kind: input, shape index: {}]
  %s5 = inlined_call_operand.vmem [shape: f32[1,32], index: 5, kind: input, shape index: {}]
  %s6 = inlined_call_operand.vmem [shape: f32[1,32], index: 6, kind: input, shape index: {}]
  %s7 = inlined_call_operand.vmem [shape: f32[16,8], index: 7, kind: output, shape index: {}]
  %s8 = sld [smem:[#allocation0]]
  $region61: #{tpu_custom_call.1} parent=0
    _
  %s10 = ssub.s32 1, %s8
  %s11 = scalar_select 0, %s10, %s8
  loop: start=0, step=1, limit=4
  $region2: #{tpu_custom_call.1} parent=0 // loop_pre_header
    _
  $region3: #{tpu_custom_call.1} parent=0 // loop_header
    %s13 = sphi 0, %s17
    %p14 = scmp.ge.s32.totalorder %s13, 4
    %s23 = sphi 0, %s25
    %s26 = sphi 0, %s23
    %s27 = sphi 0, %s26
    %s43 = sphi 0, %s27
    %s49 = sphi 0, %s51
    %s52 = sphi 0, %s49
    %s53 = sphi 0, %s52
    %s69 = sphi 0, %s53
    %s73 = sphi 0, %s73
    %s75 = sphi 0, %s73
    %s76 = sphi 0, %s75
    %s90 = sphi 0, %s76
    %s94 = sphi 0, %s94
    %s96 = sphi 0, %s94
    %s97 = sphi 0, %s96
    %s111 = sphi 0, %s97
    %s115 = sphi 0, %s115
    %s117 = sphi 0, %s115
    %s118 = sphi 0, %s117
    %s132 = sphi 0, %s118
    %s136 = sphi 0, %s136
    %s138 = sphi 0, %s136
    %s139 = sphi 0, %s138
    %s153 = sphi 0, %s139
    %s157 = sphi 0, %s157
    %s159 = sphi 0, %s157
    %s160 = sphi 0, %s159
    %s174 = sphi 0, %s160
    %s180 = sphi 0, %s182
    %s183 = sphi 0, %s180
    %s184 = sphi 0, %s183
    %s200 = sphi 0, %s184
  $region4: #{tpu_custom_call.1} parent=0 // loop_header_branch
    %16 = sbr.rel (%p14) target = $region8
  $region5: #{tpu_custom_call.1} parent=0 // loop_body
    %s18 = ssub.s32 %s13, 1
    %s19 = ssub.s32 %s13, 2
    %s20 = sadd.s32 %s13, 1
    %s21 = ssub.s32 %s13, %s20
    %p22 = scmp.eq.s32.totalorder %s21, 0
    %s24 = sadd.s32 %s23, 1
    %s25 = scalar_select %p22, %s23, %s24
    %p28 = pneg %p22
    %p29 = scmp.eq.s32.totalorder %s13, 1
    %p30 = por %p28, %p29
    %p31 = scmp.ne.s32.totalorder %s23, %s26
    %p32 = scmp.eq.s32.totalorder %s13, 0
    %p33 = por %p31, %p32
    %p34 = scmp.ne.s32.totalorder %s23, %s26
    %p35 = scmp.eq.s32.totalorder %s18, 1
    %p36 = por %p34, %p35
    %p37 = scmp.ne.s32.totalorder %s26, %s27
    %p38 = scmp.eq.s32.totalorder %s18, 0
    %p39 = por %p37, %p38
    %p40 = scmp.ne.s32.totalorder %s26, %s27
    %p41 = scmp.eq.s32.totalorder %s19, 1
    %p42 = por %p40, %p41
    %p44 = scmp.ne.s32.totalorder %s27, %s43
    %p45 = scmp.eq.s32.totalorder %s19, 0
    %p46 = por %p44, %p45
    %s47 = ssub.s32 %s13, %s20
    %p48 = scmp.eq.s32.totalorder %s47, 0
    %s50 = sadd.s32 %s49, 1
    %s51 = scalar_select %p48, %s49, %s50
    %p54 = pneg %p48
    %p55 = scmp.eq.s32.totalorder %s13, 1
    %p56 = por %p54, %p55
    %p57 = scmp.ne.s32.totalorder %s49, %s52
    %p58 = scmp.eq.s32.totalorder %s13, 0
    %p59 = por %p57, %p58
    %p60 = scmp.ne.s32.totalorder %s49, %s52
    %p61 = scmp.eq.s32.totalorder %s18, 1
    %p62 = por %p60, %p61
    %p63 = scmp.ne.s32.totalorder %s52, %s53
    %p64 = scmp.eq.s32.totalorder %s18, 0
    %p65 = por %p63, %p64
    %p66 = scmp.ne.s32.totalorder %s52, %s53
    %p67 = scmp.eq.s32.totalorder %s19, 1
    %p68 = por %p66, %p67
    %p70 = scmp.ne.s32.totalorder %s53, %s69
    %p71 = scmp.eq.s32.totalorder %s19, 0
    %p72 = por %p70, %p71
    %s74 = sadd.s32 %s73, 1
    %p77 = scmp.eq.s32.totalorder %s13, 1
    %p78 = scmp.ne.s32.totalorder %s73, %s75
    %p79 = scmp.eq.s32.totalorder %s13, 0
    %p80 = por %p78, %p79
    %p81 = scmp.ne.s32.totalorder %s73, %s75
    %p82 = scmp.eq.s32.totalorder %s18, 1
    %p83 = por %p81, %p82
    %p84 = scmp.ne.s32.totalorder %s75, %s76
    %p85 = scmp.eq.s32.totalorder %s18, 0
    %p86 = por %p84, %p85
    %p87 = scmp.ne.s32.totalorder %s75, %s76
    %p88 = scmp.eq.s32.totalorder %s19, 1
    %p89 = por %p87, %p88
    %p91 = scmp.ne.s32.totalorder %s76, %s90
    %p92 = scmp.eq.s32.totalorder %s19, 0
    %p93 = por %p91, %p92
    %s95 = sadd.s32 %s94, 1
    %p98 = scmp.eq.s32.totalorder %s13, 1
    %p99 = scmp.ne.s32.totalorder %s94, %s96
    %p100 = scmp.eq.s32.totalorder %s13, 0
    %p101 = por %p99, %p100
    %p102 = scmp.ne.s32.totalorder %s94, %s96
    %p103 = scmp.eq.s32.totalorder %s18, 1
    %p104 = por %p102, %p103
    %p105 = scmp.ne.s32.totalorder %s96, %s97
    %p106 = scmp.eq.s32.totalorder %s18, 0
    %p107 = por %p105, %p106
    %p108 = scmp.ne.s32.totalorder %s96, %s97
    %p109 = scmp.eq.s32.totalorder %s19, 1
    %p110 = por %p108, %p109
    %p112 = scmp.ne.s32.totalorder %s97, %s111
    %p113 = scmp.eq.s32.totalorder %s19, 0
    %p114 = por %p112, %p113
    %s116 = sadd.s32 %s115, 1
    %p119 = scmp.eq.s32.totalorder %s13, 1
    %p120 = scmp.ne.s32.totalorder %s115, %s117
    %p121 = scmp.eq.s32.totalorder %s13, 0
    %p122 = por %p120, %p121
    %p123 = scmp.ne.s32.totalorder %s115, %s117
    %p124 = scmp.eq.s32.totalorder %s18, 1
    %p125 = por %p123, %p124
    %p126 = scmp.ne.s32.totalorder %s117, %s118
    %p127 = scmp.eq.s32.totalorder %s18, 0
    %p128 = por %p126, %p127
    %p129 = scmp.ne.s32.totalorder %s117, %s118
    %p130 = scmp.eq.s32.totalorder %s19, 1
    %p131 = por %p129, %p130
    %p133 = scmp.ne.s32.totalorder %s118, %s132
    %p134 = scmp.eq.s32.totalorder %s19, 0
    %p135 = por %p133, %p134
    %s137 = sadd.s32 %s136, 1
    %p140 = scmp.eq.s32.totalorder %s13, 1
    %p141 = scmp.ne.s32.totalorder %s136, %s138
    %p142 = scmp.eq.s32.totalorder %s13, 0
    %p143 = por %p141, %p142
    %p144 = scmp.ne.s32.totalorder %s136, %s138
    %p145 = scmp.eq.s32.totalorder %s18, 1
    %p146 = por %p144, %p145
    %p147 = scmp.ne.s32.totalorder %s138, %s139
    %p148 = scmp.eq.s32.totalorder %s18, 0
    %p149 = por %p147, %p148
    %p150 = scmp.ne.s32.totalorder %s138, %s139
    %p151 = scmp.eq.s32.totalorder %s19, 1
    %p152 = por %p150, %p151
    %p154 = scmp.ne.s32.totalorder %s139, %s153
    %p155 = scmp.eq.s32.totalorder %s19, 0
    %p156 = por %p154, %p155
    %s158 = sadd.s32 %s157, 1
    %p161 = scmp.eq.s32.totalorder %s13, 1
    %p162 = scmp.ne.s32.totalorder %s157, %s159
    %p163 = scmp.eq.s32.totalorder %s13, 0
    %p164 = por %p162, %p163
    %p165 = scmp.ne.s32.totalorder %s157, %s159
    %p166 = scmp.eq.s32.totalorder %s18, 1
    %p167 = por %p165, %p166
    %p168 = scmp.ne.s32.totalorder %s159, %s160
    %p169 = scmp.eq.s32.totalorder %s18, 0
    %p170 = por %p168, %p169
    %p171 = scmp.ne.s32.totalorder %s159, %s160
    %p172 = scmp.eq.s32.totalorder %s19, 1
    %p173 = por %p171, %p172
    %p175 = scmp.ne.s32.totalorder %s160, %s174
    %p176 = scmp.eq.s32.totalorder %s19, 0
    %p177 = por %p175, %p176
    %s178 = ssub.s32 %s13, %s20
    %p179 = scmp.eq.s32.totalorder %s178, 0
    %s181 = sadd.s32 %s180, 1
    %s182 = scalar_select %p179, %s180, %s181
    %p185 = pneg %p179
    %p186 = scmp.eq.s32.totalorder %s13, 1
    %p187 = por %p185, %p186
    %p188 = scmp.ne.s32.totalorder %s180, %s183
    %p189 = scmp.eq.s32.totalorder %s13, 0
    %p190 = por %p188, %p189
    %p191 = scmp.ne.s32.totalorder %s180, %s183
    %p192 = scmp.eq.s32.totalorder %s18, 1
    %p193 = por %p191, %p192
    %p194 = scmp.ne.s32.totalorder %s183, %s184
    %p195 = scmp.eq.s32.totalorder %s18, 0
    %p196 = por %p194, %p195
    %p197 = scmp.ne.s32.totalorder %s183, %s184
    %p198 = scmp.eq.s32.totalorder %s19, 1
    %p199 = por %p197, %p198
    %p201 = scmp.ne.s32.totalorder %s184, %s200
    %p202 = scmp.eq.s32.totalorder %s19, 0
    %p203 = por %p201, %p202
    %p204 = scmp.le.s32.totalorder 1, %s13
    %p205 = scmp.lt.s32.totalorder %s13, 3
    %p206 = pnand %p204, %p205
    %p207 = pneg %p206
    // Predicated region
    $region9: #{tpu_custom_call.1} parent=5 // pred_check
      _
    $region10: #{tpu_custom_call.1} parent=5 // pred_check_branch
      %209 = sbr.rel (%p206) target = $region12
    $region11: #{tpu_custom_call.1} parent=5 // pred_region
      %s210 = ssub.s32 %s13, 1
      // Predicated region
      $region13: #{tpu_custom_call.1} parent=11 // pred_check
        %p211 = pneg %p86
      $region14: #{tpu_custom_call.1} parent=11 // pred_check_branch
        %213 = sbr.rel (%p211) target = $region16
      $region15: #{tpu_custom_call.1} parent=11 // pred_region
        _
      $region16: #{tpu_custom_call.1} parent=11 // pred_fallthru
        _
      // Predicated region
      $region17: #{tpu_custom_call.1} parent=11 // pred_check
        %p214 = pneg %p107
      $region18: #{tpu_custom_call.1} parent=11 // pred_check_branch
        %216 = sbr.rel (%p214) target = $region20
      $region19: #{tpu_custom_call.1} parent=11 // pred_region
        _
      $region20: #{tpu_custom_call.1} parent=11 // pred_fallthru
        _
      // Predicated region
      $region21: #{tpu_custom_call.1} parent=11 // pred_check
        %p217 = pneg %p128
      $region22: #{tpu_custom_call.1} parent=11 // pred_check_branch
        %219 = sbr.rel (%p217) target = $region24
      $region23: #{tpu_custom_call.1} parent=11 // pred_region
        _
      $region24: #{tpu_custom_call.1} parent=11 // pred_fallthru
        _
      // Predicated region
      $region25: #{tpu_custom_call.1} parent=11 // pred_check
        %p220 = pneg %p149
      $region26: #{tpu_custom_call.1} parent=11 // pred_check_branch
        %222 = sbr.rel (%p220) target = $region28
      $region27: #{tpu_custom_call.1} parent=11 // pred_region
        _
      $region28: #{tpu_custom_call.1} parent=11 // pred_fallthru
        _
      // Predicated region
      $region29: #{tpu_custom_call.1} parent=11 // pred_check
        %p223 = pneg %p170
      $region30: #{tpu_custom_call.1} parent=11 // pred_check_branch
        %225 = sbr.rel (%p223) target = $region32
      $region31: #{tpu_custom_call.1} parent=11 // pred_region
        _
      $region32: #{tpu_custom_call.1} parent=11 // pred_fallthru
        _
    $region12: #{tpu_custom_call.1} parent=5 // pred_fallthru
      _
    %p226 = scmp.lt.s32.totalorder %s13, 2
    // Predicated region
    $region33: #{tpu_custom_call.1} parent=5 // pred_check
      %p227 = pneg %p226
    $region34: #{tpu_custom_call.1} parent=5 // pred_check_branch
      %229 = sbr.rel (%p227) target = $region36
    $region35: #{tpu_custom_call.1} parent=5 // pred_region
      // Predicated region
      $region37: #{tpu_custom_call.1} parent=35 // pred_check
        %p230 = pneg %p33
      $region38: #{tpu_custom_call.1} parent=35 // pred_check_branch
        %232 = sbr.rel (%p230) target = $region40
      $region39: #{tpu_custom_call.1} parent=35 // pred_region
        %s233 = smul.u32 8, %s13
        %p234 = scmp.lt.s32.totalorder %s233, 15
        %s235 = scalar_select %p234, %s233, 15
        %s236 = smul.addr %s235, 4
        %s237 = scalar_lea.vmem %s0, %s236
        %s238 = smul.u32 8, %s13
      $region40: #{tpu_custom_call.1} parent=35 // pred_fallthru
        _
      // Predicated region
      $region41: #{tpu_custom_call.1} parent=35 // pred_check
        %p239 = pneg %p59
      $region42: #{tpu_custom_call.1} parent=35 // pred_check_branch
        %241 = sbr.rel (%p239) target = $region44
      $region43: #{tpu_custom_call.1} parent=35 // pred_region
        %p242 = scmp.lt.s32.totalorder %s13, 1
        %s243 = scalar_select %p242, %s13, 1
        %s244 = smul.addr %s243, 4
        %s245 = scalar_lea.vmem %s1, %s244
      $region44: #{tpu_custom_call.1} parent=35 // pred_fallthru
        _
    $region36: #{tpu_custom_call.1} parent=5 // pred_fallthru
      _
    %p246 = scmp.le.s32.totalorder 1, %s13
    %p247 = scmp.lt.s32.totalorder %s13, 3
    %p248 = pnand %p246, %p247
    %p249 = pneg %p248
    // Predicated region
    $region45: #{tpu_custom_call.1} parent=5 // pred_check
      _
    $region46: #{tpu_custom_call.1} parent=5 // pred_check_branch
      %251 = sbr.rel (%p248) target = $region48
    $region47: #{tpu_custom_call.1} parent=5 // pred_region
      %s252 = ssub.s32 %s13, 1
      %s253 = smul.u32 8, %s18
      %p254 = scmp.lt.s32.totalorder %s253, 15
      %s255 = scalar_select %p254, %s253, 15
      %s256 = smul.addr %s255, 4
      %s257 = scalar_lea.vmem %s0, %s256
      %p258 = pneg %p39
      %p259 = pneg %p36
      %p260 = scmp.lt.s32.totalorder %s18, 1
      %s261 = scalar_select %p260, %s18, 1
      %s262 = smul.addr %s261, 4
      %s263 = scalar_lea.vmem %s1, %s262
      %p264 = pneg %p65
      %p265 = pneg %p62
      %p266 = pneg %p86
      %p267 = pneg %p83
      %p268 = pneg %p107
      %p269 = pneg %p104
      %p270 = pneg %p128
      %p271 = pneg %p125
      %p272 = pneg %p149
      %p273 = pneg %p146
      %p274 = pneg %p170
      %p275 = pneg %p167
      %p276 = pneg %p196
      %p277 = pneg %p193
      %p278 = scmp.lt.s32.totalorder %s18, 1
      %s279 = scalar_select %p278, %s18, 1
      %s280 = smul.addr %s279, 8
      %s281 = scalar_lea.vmem %s7, %s280
      %s282 = smul.u32 8, %s18
      %p283 = scmp.lt.s32.totalorder %s282, 15
      %s284 = scalar_select %p283, %s282, 15
      %s285 = smul.addr %s284, 4
      %s286 = scalar_lea.vmem %s0, %s285
      %s287 = smul.u32 8, %s18
      %p288 = scmp.lt.s32.totalorder %s18, 1
      %s289 = scalar_select %p288, %s18, 1
      %s290 = smul.addr %s289, 4
      %s291 = scalar_lea.vmem %s1, %s290
      %p292 = scmp.lt.s32.totalorder %s18, 1
      %s293 = scalar_select %p292, %s18, 1
      %s294 = smul.addr %s293, 8
      %s295 = scalar_lea.vmem %s7, %s294
      %v297 = vld [vmem:[%s286] sm:$0xf]
      %v298 = vld [vmem:[%s286 + $0x4] sm:$0xf]
      %v299 = vld [vmem:[%s286 + $0x8] sm:$0xf]
      %v300 = vld [vmem:[%s286 + $0xc] sm:$0xf]
      %v301 = vld [vmem:[%s286 + $0x10] sm:$0xf]
      %v302 = vld [vmem:[%s286 + $0x14] sm:$0xf]
      %v303 = vld [vmem:[%s286 + $0x18] sm:$0xf]
      %v304 = vld [vmem:[%s286 + $0x1c] sm:$0xf]
      %v305 = vld [vmem:[%s2] sm:$0xf]
      %v306 = vld [vmem:[%s2 + $0x4] sm:$0xf]
      %v307 = vld [vmem:[%s2 + $0x8] sm:$0xf]
      %v308 = vld [vmem:[%s2 + $0xc] sm:$0xf]
      %v309 = vld [vmem:[%s3] sm:$0x1]
      %v311 = vlaneseq
      %v312 = vshrl.u32 %v311, 7
      %v313 = vsub.s32 0, %v312
      %v314 = vrot.slane %v309, %v313
      %v324 = vunpack.c.l.b16 %v297
      %v325 = vunpack.c.l.b16 %v298
      %v326 = vunpack.c.l.b16 %v299
      %v327 = vunpack.c.l.b16 %v300
      %v328 = vunpack.c.l.b16 %v301
      %v329 = vunpack.c.l.b16 %v302
      %v330 = vunpack.c.l.b16 %v303
      %v331 = vunpack.c.l.b16 %v304
      %v332 = vpack.c.b16 %v325, %v324
      %v333 = vpack.c.b16 %v327, %v326
      %v334 = vpack.c.b16 %v329, %v328
      %v335 = vpack.c.b16 %v331, %v330
      %v340 = vunpack.c.l.b16 %v305
      %v341 = vunpack.c.l.b16 %v306
      %v342 = vunpack.c.l.b16 %v307
      %v343 = vunpack.c.l.b16 %v308
      %v344 = vpack.c.b16 %v341, %v340
      %v345 = vpack.c.b16 %v343, %v342
      %vm348 = vcmask 261120
      %v350 = vsel %vm348, %v332, 0
      %v353 = vsel %vm348, %v333, 0
      %v356 = vsel %vm348, %v334, 0
      %v359 = vsel %vm348, %v335, 0
      %361 = vmatprep.subr.bf16.mxu0 0
      %362 = vmatpush1.bf16.msra.mxu0 %v344
      %363 = vmatprep.subr.bf16.mxu0 0
      %364 = vmatpush1.bf16.msra.mxu0 %v345
      %365 = vmatprep.subr.bf16.mxu0 0
      %366 = vmatpush1.bf16.msra.mxu0 0
      %367 = vmatprep.subr.bf16.mxu0 0
      %368 = vmatpush1.bf16.msra.mxu0 0
      %369 = vmatprep.subr.bf16.mxu0 0
      %370 = vmatpush1.bf16.msra.mxu0 0
      %371 = vmatprep.subr.bf16.mxu0 0
      %372 = vmatpush1.bf16.msra.mxu0 0
      %373 = vmatprep.subr.bf16.mxu0 0
      %374 = vmatpush1.bf16.msra.mxu0 0
      %375 = vmatprep.subr.bf16.mxu0 0
      %376 = vmatpush1.bf16.msra.mxu0 0
      %377 = vmatprep.subr.bf16.mxu0 0
      %378 = vmatpush1.bf16.msra.mxu0 0
      %379 = vmatprep.subr.bf16.mxu0 0
      %380 = vmatpush1.bf16.msra.mxu0 0
      %381 = vmatprep.subr.bf16.mxu0 0
      %382 = vmatpush1.bf16.msra.mxu0 0
      %383 = vmatprep.subr.bf16.mxu0 0
      %384 = vmatpush1.bf16.msra.mxu0 0
      %385 = vmatprep.subr.bf16.mxu0 0
      %386 = vmatpush1.bf16.msra.mxu0 0
      %387 = vmatprep.subr.bf16.mxu0 0
      %388 = vmatpush1.bf16.msra.mxu0 0
      %389 = vmatprep.subr.bf16.mxu0 0
      %390 = vmatpush1.bf16.msra.mxu0 0
      %391 = vmatprep.subr.bf16.mxu0 0
      %392 = vmatpush1.bf16.msra.mxu0 0
      %393 = vmatprep.mubr.bf16.mxu0 0
      %394 = vmatmul.mubr.bf16.gmra.mrb[0].mxu0 %v350
      %v395 = vpop.f32.mrb[0].mxu0
      %v396 = vadd.f32 %v314, %v395
      %v397 = vpop.f32.mrb[0].mxu0
      %v398 = vpop.f32.mrb[0].mxu0
      %v399 = vadd.f32 %v314, %v398
      %v400 = vpop.f32.mrb[0].mxu0
      %401 = vmatprep.mubr.bf16.mxu0 0
      %402 = vmatmul.mubr.bf16.gmra.mrb[0].mxu0 %v353
      %v403 = vpop.f32.mrb[0].mxu0
      %v404 = vadd.f32 %v314, %v403
      %v405 = vpop.f32.mrb[0].mxu0
      %v406 = vpop.f32.mrb[0].mxu0
      %v407 = vadd.f32 %v314, %v406
      %v408 = vpop.f32.mrb[0].mxu0
      %409 = vmatprep.mubr.bf16.mxu0 0
      %410 = vmatmul.mubr.bf16.gmra.mrb[0].mxu0 %v356
      %v411 = vpop.f32.mrb[0].mxu0
      %v412 = vadd.f32 %v314, %v411
      %v413 = vpop.f32.mrb[0].mxu0
      %v414 = vpop.f32.mrb[0].mxu0
      %v415 = vadd.f32 %v314, %v414
      %v416 = vpop.f32.mrb[0].mxu0
      %417 = vmatprep.mubr.bf16.mxu0 0
      %418 = vmatmul.mubr.bf16.gmra.mrb[0].mxu0 %v359
      %v419 = vpop.f32.mrb[0].mxu0
      %v420 = vadd.f32 %v314, %v419
      %v421 = vpop.f32.mrb[0].mxu0
      %v422 = vpop.f32.mrb[0].mxu0
      %v423 = vadd.f32 %v314, %v422
      %v424 = vpop.f32.mrb[0].mxu0
      %425 = vdwg.mxu0
      %v426 = vld [vmem:[%s291] sm:$0xf]
      %v427 = vld [vmem:[%s4] sm:$0xf]
      %v428 = vld [vmem:[%s4 + $0x4] sm:$0xf]
      %v429 = vld [vmem:[%s5] sm:$0x1]
      %v431 = vlaneseq
      %v432 = vshrl.u32 %v431, 7
      %v433 = vsub.s32 0, %v432
      %v434 = vrot.slane %v429, %v433
      %v438 = vunpack.c.l.b16 %v427
      %v439 = vunpack.c.l.b16 %v428
      %v440 = vpack.c.b16 %v439, %v438
      %vm442 = vcmask 130048
      %v444 = vsel %vm442, %v426, 0
      %446 = vmatprep.subr.bf16.mxu0 0
      %447 = vmatpush1.bf16.msra.mxu0 %v440
      %448 = vmatprep.subr.bf16.mxu0 0
      %449 = vmatpush1.bf16.msra.mxu0 0
      %450 = vmatprep.subr.bf16.mxu0 0
      %451 = vmatpush1.bf16.msra.mxu0 0
      %452 = vmatprep.subr.bf16.mxu0 0
      %453 = vmatpush1.bf16.msra.mxu0 0
      %454 = vmatprep.subr.bf16.mxu0 0
      %455 = vmatpush1.bf16.msra.mxu0 0
      %456 = vmatprep.subr.bf16.mxu0 0
      %457 = vmatpush1.bf16.msra.mxu0 0
      %458 = vmatprep.subr.bf16.mxu0 0
      %459 = vmatpush1.bf16.msra.mxu0 0
      %460 = vmatprep.subr.bf16.mxu0 0
      %461 = vmatpush1.bf16.msra.mxu0 0
      %462 = vmatprep.subr.bf16.mxu0 0
      %463 = vmatpush1.bf16.msra.mxu0 0
      %464 = vmatprep.subr.bf16.mxu0 0
      %465 = vmatpush1.bf16.msra.mxu0 0
      %466 = vmatprep.subr.bf16.mxu0 0
      %467 = vmatpush1.bf16.msra.mxu0 0
      %468 = vmatprep.subr.bf16.mxu0 0
      %469 = vmatpush1.bf16.msra.mxu0 0
      %470 = vmatprep.subr.bf16.mxu0 0
      %471 = vmatpush1.bf16.msra.mxu0 0
      %472 = vmatprep.subr.bf16.mxu0 0
      %473 = vmatpush1.bf16.msra.mxu0 0
      %474 = vmatprep.subr.bf16.mxu0 0
      %475 = vmatpush1.bf16.msra.mxu0 0
      %476 = vmatprep.subr.bf16.mxu0 0
      %477 = vmatpush1.bf16.msra.mxu0 0
      %478 = vmatprep.mubr.bf16.mxu0 0
      %479 = vmatmul.mubr.bf16.gmra.mrb[0].mxu0 %v444
      %v480 = vpop.f32.mrb[0].mxu0
      %v481 = vadd.f32 %v434, %v480
      %v482 = vpop.f32.mrb[0].mxu0
      %v483 = vpop.f32.mrb[0].mxu0
      %v484 = vpop.f32.mrb[0].mxu0
      %485 = vdwg.mxu0
      %v487 = vcombine.high %v481, %v481
      %v489 = vunpack.c.l.s4 1966171168
      %v490 = vunpack.c.0.s8 %v489
      %v491 = vlaneseq
      %v492 = vshrl.u32 %v491, 7
      %v493 = vsub.s32 %v490, %v492
      %v494 = vrot.slane %v481, %v493
      %v496 = vunpack.c.l.s4 1966171168
      %v497 = vunpack.c.0.s8 %v496
      %v498 = vlaneseq
      %v499 = vshrl.u32 %v498, 7
      %v500 = vsub.s32 %v497, %v499
      %v501 = vrot.slane %v487, %v500
      %v502 = vcombine.high %v494, %v494
      %v503 = vcombine.high %v501, %v501
      %v505 = vunpack.c.l.s4 1966171168
      %v506 = vunpack.c.0.s8 %v505
      %v507 = vlaneseq
      %v508 = vshrl.u32 %v507, 7
      %v509 = vsub.s32 %v506, %v508
      %v510 = vrot.slane %v494, %v509
      %v512 = vunpack.c.l.s4 1966171168
      %v513 = vunpack.c.0.s8 %v512
      %v514 = vlaneseq
      %v515 = vshrl.u32 %v514, 7
      %v516 = vsub.s32 %v513, %v515
      %v517 = vrot.slane %v501, %v516
      %v519 = vunpack.c.l.s4 1966171168
      %v520 = vunpack.c.0.s8 %v519
      %v521 = vlaneseq
      %v522 = vshrl.u32 %v521, 7
      %v523 = vsub.s32 %v520, %v522
      %v524 = vrot.slane %v502, %v523
      %v526 = vunpack.c.l.s4 1966171168
      %v527 = vunpack.c.0.s8 %v526
      %v528 = vlaneseq
      %v529 = vshrl.u32 %v528, 7
      %v530 = vsub.s32 %v527, %v529
      %v531 = vrot.slane %v503, %v530
      %v532 = vcombine.high %v510, %v510
      %v533 = vcombine.high %v517, %v517
      %v534 = vcombine.high %v524, %v524
      %v535 = vcombine.high %v531, %v531
      %v536 = vlaneseq
      %v537 = vshrl.u32 %v536, 7
      %v538 = vsub.s32 0, %v537
      %v539 = vrot.slane %v510, %v538
      %v540 = vlaneseq
      %v541 = vshrl.u32 %v540, 7
      %v542 = vsub.s32 0, %v541
      %v543 = vrot.slane %v524, %v542
      %v544 = vlaneseq
      %v545 = vshrl.u32 %v544, 7
      %v546 = vsub.s32 0, %v545
      %v547 = vrot.slane %v532, %v546
      %v548 = vlaneseq
      %v549 = vshrl.u32 %v548, 7
      %v550 = vsub.s32 0, %v549
      %v551 = vrot.slane %v534, %v550
      %v552 = vlaneseq
      %v553 = vshrl.u32 %v552, 7
      %v554 = vsub.s32 0, %v553
      %v555 = vrot.slane %v517, %v554
      %v556 = vlaneseq
      %v557 = vshrl.u32 %v556, 7
      %v558 = vsub.s32 0, %v557
      %v559 = vrot.slane %v531, %v558
      %v560 = vlaneseq
      %v561 = vshrl.u32 %v560, 7
      %v562 = vsub.s32 0, %v561
      %v563 = vrot.slane %v533, %v562
      %v564 = vlaneseq
      %v565 = vshrl.u32 %v564, 7
      %v566 = vsub.s32 0, %v565
      %v567 = vrot.slane %v535, %v566
      %v576 = vadd.f32 %v396, %v539
      %v577 = vadd.f32 %v399, %v543
      %v578 = vadd.f32 %v404, %v547
      %v579 = vadd.f32 %v407, %v551
      %v580 = vadd.f32 %v412, %v555
      %v581 = vadd.f32 %v415, %v559
      %v582 = vadd.f32 %v420, %v563
      %v583 = vadd.f32 %v423, %v567
      %v584 = vtanh.pop %v576
      %v585 = vtanh.pop %v577
      %v586 = vtanh.pop %v578
      %v587 = vtanh.pop %v579
      %v588 = vtanh.pop %v580
      %v589 = vtanh.pop %v581
      %v590 = vtanh.pop %v582
      %v591 = vtanh.pop %v583
      %v592 = vld [vmem:[%s6] sm:$0x1]
      %v594 = vlaneseq
      %v595 = vshrl.u32 %v594, 7
      %v596 = vsub.s32 0, %v595
      %v597 = vrot.slane %v592, %v596
      %v599 = vmul.f32 %v584, %v597
      %v600 = vmul.f32 %v585, %v597
      %v601 = vmul.f32 %v586, %v597
      %v602 = vmul.f32 %v587, %v597
      %v603 = vmul.f32 %v588, %v597
      %v604 = vmul.f32 %v589, %v597
      %v605 = vmul.f32 %v590, %v597
      %v606 = vmul.f32 %v591, %v597
      %v607 = vsel %vm348, %v599, 0.0
      %608 = vadd.xlane.f32.xlu0 %v607
      %v609 = vpop.xlane.xlu0 %608
      %v610 = vsel %vm348, %v600, 0.0
      %611 = vadd.xlane.f32.xlu0 %v610
      %v612 = vpop.xlane.xlu0 %611
      %v613 = vsel %vm348, %v601, 0.0
      %614 = vadd.xlane.f32.xlu0 %v613
      %v615 = vpop.xlane.xlu0 %614
      %v616 = vsel %vm348, %v602, 0.0
      %617 = vadd.xlane.f32.xlu0 %v616
      %v618 = vpop.xlane.xlu0 %617
      %v619 = vsel %vm348, %v603, 0.0
      %620 = vadd.xlane.f32.xlu0 %v619
      %v621 = vpop.xlane.xlu0 %620
      %v622 = vsel %vm348, %v604, 0.0
      %623 = vadd.xlane.f32.xlu0 %v622
      %v624 = vpop.xlane.xlu0 %623
      %v625 = vsel %vm348, %v605, 0.0
      %626 = vadd.xlane.f32.xlu0 %v625
      %v627 = vpop.xlane.xlu0 %626
      %v628 = vsel %vm348, %v606, 0.0
      %629 = vadd.xlane.f32.xlu0 %v628
      %v630 = vpop.xlane.xlu0 %629
      %v639 = vlaneseq
      %v640 = vand.u32 %v639, 127
      %v641 = vlaneseq
      %v642 = vshrl.u32 %v641, 7
      %v643 = vsub.s32 %v640, %v642
      %v644 = vrot.slane %v609, %v643
      %v645 = vlaneseq
      %v646 = vshrl.u32 %v645, 7
      %v647 = vsub.s32 %v640, %v646
      %v648 = vrot.slane %v612, %v647
      %v649 = vlaneseq
      %v650 = vshrl.u32 %v649, 7
      %v651 = vsub.s32 %v640, %v650
      %v652 = vrot.slane %v615, %v651
      %v653 = vlaneseq
      %v654 = vshrl.u32 %v653, 7
      %v655 = vsub.s32 %v640, %v654
      %v656 = vrot.slane %v618, %v655
      %v657 = vlaneseq
      %v658 = vshrl.u32 %v657, 7
      %v659 = vsub.s32 %v640, %v658
      %v660 = vrot.slane %v621, %v659
      %v661 = vlaneseq
      %v662 = vshrl.u32 %v661, 7
      %v663 = vsub.s32 %v640, %v662
      %v664 = vrot.slane %v624, %v663
      %v665 = vlaneseq
      %v666 = vshrl.u32 %v665, 7
      %v667 = vsub.s32 %v640, %v666
      %v668 = vrot.slane %v627, %v667
      %v669 = vlaneseq
      %v670 = vshrl.u32 %v669, 7
      %v671 = vsub.s32 %v640, %v670
      %v672 = vrot.slane %v630, %v671
      %vm673 = vcmask 1041409
      %v674 = vsel %vm673, %v648, %v644
      %vm675 = vcmask 1042434
      %v676 = vsel %vm675, %v652, %v674
      %vm677 = vcmask 1043459
      %v678 = vsel %vm677, %v656, %v676
      %vm679 = vcmask 1044484
      %v680 = vsel %vm679, %v660, %v678
      %vm681 = vcmask 1045509
      %v682 = vsel %vm681, %v664, %v680
      %vm683 = vcmask 1046534
      %v684 = vsel %vm683, %v668, %v682
      %vm685 = vcmask 1047559
      %v686 = vsel %vm685, %v672, %v684
      %vm688 = vcmask 64512
      %v689 = vsel %vm688, %v686, -inf
      %690 = vmax.xlane.f32.xlu0 %v689
      %v691 = vpop.xlane.xlu0 %690
      %v693 = vlaneseq
      %v694 = vshrl.u32 %v693, 7
      %v695 = vsub.s32 0, %v694
      %v696 = vrot.slane %v691, %v695
      %v697 = vlaneseq
      %v698 = vshrl.u32 %v697, 7
      %v699 = vsub.s32 1, %v698
      %v700 = vrot.slane %v691, %v699
      %v701 = vlaneseq
      %v702 = vshrl.u32 %v701, 7
      %v703 = vsub.s32 2, %v702
      %v704 = vrot.slane %v691, %v703
      %v705 = vlaneseq
      %v706 = vshrl.u32 %v705, 7
      %v707 = vsub.s32 3, %v706
      %v708 = vrot.slane %v691, %v707
      %v709 = vlaneseq
      %v710 = vshrl.u32 %v709, 7
      %v711 = vsub.s32 4, %v710
      %v712 = vrot.slane %v691, %v711
      %v713 = vlaneseq
      %v714 = vshrl.u32 %v713, 7
      %v715 = vsub.s32 5, %v714
      %v716 = vrot.slane %v691, %v715
      %v717 = vlaneseq
      %v718 = vshrl.u32 %v717, 7
      %v719 = vsub.s32 6, %v718
      %v720 = vrot.slane %v691, %v719
      %v721 = vlaneseq
      %v722 = vshrl.u32 %v721, 7
      %v723 = vsub.s32 7, %v722
      %v724 = vrot.slane %v691, %v723
      %v733 = vsub.f32 %v609, %v696
      %v734 = vsub.f32 %v612, %v700
      %v735 = vsub.f32 %v615, %v704
      %v736 = vsub.f32 %v618, %v708
      %v737 = vsub.f32 %v621, %v712
      %v738 = vsub.f32 %v624, %v716
      %v739 = vsub.f32 %v627, %v720
      %v740 = vsub.f32 %v630, %v724
      %v741 = vmul.f32 %v733, 1.442695
      %v742 = vpow.pop %v741
      %v743 = vmul.f32 %v734, 1.442695
      %v744 = vpow.pop %v743
      %v745 = vmul.f32 %v735, 1.442695
      %v746 = vpow.pop %v745
      %v747 = vmul.f32 %v736, 1.442695
      %v748 = vpow.pop %v747
      %v749 = vmul.f32 %v737, 1.442695
      %v750 = vpow.pop %v749
      %v751 = vmul.f32 %v738, 1.442695
      %v752 = vpow.pop %v751
      %v753 = vmul.f32 %v739, 1.442695
      %v754 = vpow.pop %v753
      %v755 = vmul.f32 %v740, 1.442695
      %v756 = vpow.pop %v755
      %765 = vset.pattern.permute.xlu0 0
      %766 = vperm.xlu0 %765, %v742
      %v767 = vpop.permute.xlu0 %766
      %768 = vset.pattern.permute.xlu0 0
      %769 = vperm.xlu0 %768, %v744
      %v770 = vpop.permute.xlu0 %769
      %771 = vset.pattern.permute.xlu0 0
      %772 = vperm.xlu0 %771, %v746
      %v773 = vpop.permute.xlu0 %772
      %774 = vset.pattern.permute.xlu0 0
      %775 = vperm.xlu0 %774, %v748
      %v776 = vpop.permute.xlu0 %775
      %777 = vset.pattern.permute.xlu0 0
      %778 = vperm.xlu0 %777, %v750
      %v779 = vpop.permute.xlu0 %778
      %780 = vset.pattern.permute.xlu0 0
      %781 = vperm.xlu0 %780, %v752
      %v782 = vpop.permute.xlu0 %781
      %783 = vset.pattern.permute.xlu0 0
      %784 = vperm.xlu0 %783, %v754
      %v785 = vpop.permute.xlu0 %784
      %786 = vset.pattern.permute.xlu0 0
      %787 = vperm.xlu0 %786, %v756
      %v788 = vpop.permute.xlu0 %787
      %v789 = vlaneseq
      %v790 = vshrl.u32 %v789, 7
      %v791 = vsub.s32 %v640, %v790
      %v792 = vrot.slane %v767, %v791
      %v793 = vlaneseq
      %v794 = vshrl.u32 %v793, 7
      %v795 = vsub.s32 %v640, %v794
      %v796 = vrot.slane %v770, %v795
      %v797 = vlaneseq
      %v798 = vshrl.u32 %v797, 7
      %v799 = vsub.s32 %v640, %v798
      %v800 = vrot.slane %v773, %v799
      %v801 = vlaneseq
      %v802 = vshrl.u32 %v801, 7
      %v803 = vsub.s32 %v640, %v802
      %v804 = vrot.slane %v776, %v803
      %v805 = vlaneseq
      %v806 = vshrl.u32 %v805, 7
      %v807 = vsub.s32 %v640, %v806
      %v808 = vrot.slane %v779, %v807
      %v809 = vlaneseq
      %v810 = vshrl.u32 %v809, 7
      %v811 = vsub.s32 %v640, %v810
      %v812 = vrot.slane %v782, %v811
      %v813 = vlaneseq
      %v814 = vshrl.u32 %v813, 7
      %v815 = vsub.s32 %v640, %v814
      %v816 = vrot.slane %v785, %v815
      %v817 = vlaneseq
      %v818 = vshrl.u32 %v817, 7
      %v819 = vsub.s32 %v640, %v818
      %v820 = vrot.slane %v788, %v819
      %v821 = vsel %vm673, %v796, %v792
      %v822 = vsel %vm675, %v800, %v821
      %v823 = vsel %vm677, %v804, %v822
      %v824 = vsel %vm679, %v808, %v823
      %v825 = vsel %vm681, %v812, %v824
      %v826 = vsel %vm683, %v816, %v825
      %v827 = vsel %vm685, %v820, %v826
      %v829 = vsel %vm688, %v827, 0.0
      %830 = vadd.xlane.f32.xlu0 %v829
      %v831 = vpop.xlane.xlu0 %830
      %v833 = vlaneseq
      %v834 = vshrl.u32 %v833, 7
      %v835 = vsub.s32 0, %v834
      %v836 = vrot.slane %v831, %v835
      %v837 = vlaneseq
      %v838 = vshrl.u32 %v837, 7
      %v839 = vsub.s32 1, %v838
      %v840 = vrot.slane %v831, %v839
      %v841 = vlaneseq
      %v842 = vshrl.u32 %v841, 7
      %v843 = vsub.s32 2, %v842
      %v844 = vrot.slane %v831, %v843
      %v845 = vlaneseq
      %v846 = vshrl.u32 %v845, 7
      %v847 = vsub.s32 3, %v846
      %v848 = vrot.slane %v831, %v847
      %v849 = vlaneseq
      %v850 = vshrl.u32 %v849, 7
      %v851 = vsub.s32 4, %v850
      %v852 = vrot.slane %v831, %v851
      %v853 = vlaneseq
      %v854 = vshrl.u32 %v853, 7
      %v855 = vsub.s32 5, %v854
      %v856 = vrot.slane %v831, %v855
      %v857 = vlaneseq
      %v858 = vshrl.u32 %v857, 7
      %v859 = vsub.s32 6, %v858
      %v860 = vrot.slane %v831, %v859
      %v861 = vlaneseq
      %v862 = vshrl.u32 %v861, 7
      %v863 = vsub.s32 7, %v862
      %v864 = vrot.slane %v831, %v863
      %v873 = vrcp.pop %v836
      %v874 = vmul.f32 %v742, %v873
      %v875 = vrcp.pop %v840
      %v876 = vmul.f32 %v744, %v875
      %v877 = vrcp.pop %v844
      %v878 = vmul.f32 %v746, %v877
      %v879 = vrcp.pop %v848
      %v880 = vmul.f32 %v748, %v879
      %v881 = vrcp.pop %v852
      %v882 = vmul.f32 %v750, %v881
      %v883 = vrcp.pop %v856
      %v884 = vmul.f32 %v752, %v883
      %v885 = vrcp.pop %v860
      %v886 = vmul.f32 %v754, %v885
      %v887 = vrcp.pop %v864
      %v888 = vmul.f32 %v756, %v887
      %897 = vset.pattern.permute.xlu0 0
      %898 = vperm.xlu0 %897, %v874
      %v899 = vpop.permute.xlu0 %898
      %900 = vset.pattern.permute.xlu0 0
      %901 = vperm.xlu0 %900, %v876
      %v902 = vpop.permute.xlu0 %901
      %903 = vset.pattern.permute.xlu0 0
      %904 = vperm.xlu0 %903, %v878
      %v905 = vpop.permute.xlu0 %904
      %906 = vset.pattern.permute.xlu0 0
      %907 = vperm.xlu0 %906, %v880
      %v908 = vpop.permute.xlu0 %907
      %909 = vset.pattern.permute.xlu0 0
      %910 = vperm.xlu0 %909, %v882
      %v911 = vpop.permute.xlu0 %910
      %912 = vset.pattern.permute.xlu0 0
      %913 = vperm.xlu0 %912, %v884
      %v914 = vpop.permute.xlu0 %913
      %915 = vset.pattern.permute.xlu0 0
      %916 = vperm.xlu0 %915, %v886
      %v917 = vpop.permute.xlu0 %916
      %918 = vset.pattern.permute.xlu0 0
      %919 = vperm.xlu0 %918, %v888
      %v920 = vpop.permute.xlu0 %919
      %v921 = vlaneseq
      %v922 = vshrl.u32 %v921, 7
      %v923 = vsub.s32 %v640, %v922
      %v924 = vrot.slane %v899, %v923
      %v925 = vlaneseq
      %v926 = vshrl.u32 %v925, 7
      %v927 = vsub.s32 %v640, %v926
      %v928 = vrot.slane %v902, %v927
      %v929 = vlaneseq
      %v930 = vshrl.u32 %v929, 7
      %v931 = vsub.s32 %v640, %v930
      %v932 = vrot.slane %v905, %v931
      %v933 = vlaneseq
      %v934 = vshrl.u32 %v933, 7
      %v935 = vsub.s32 %v640, %v934
      %v936 = vrot.slane %v908, %v935
      %v937 = vlaneseq
      %v938 = vshrl.u32 %v937, 7
      %v939 = vsub.s32 %v640, %v938
      %v940 = vrot.slane %v911, %v939
      %v941 = vlaneseq
      %v942 = vshrl.u32 %v941, 7
      %v943 = vsub.s32 %v640, %v942
      %v944 = vrot.slane %v914, %v943
      %v945 = vlaneseq
      %v946 = vshrl.u32 %v945, 7
      %v947 = vsub.s32 %v640, %v946
      %v948 = vrot.slane %v917, %v947
      %v949 = vlaneseq
      %v950 = vshrl.u32 %v949, 7
      %v951 = vsub.s32 %v640, %v950
      %v952 = vrot.slane %v920, %v951
      %v953 = vsel %vm673, %v928, %v924
      %v954 = vsel %vm675, %v932, %v953
      %v955 = vsel %vm677, %v936, %v954
      %v956 = vsel %vm679, %v940, %v955
      %v957 = vsel %vm681, %v944, %v956
      %v958 = vsel %vm683, %v948, %v957
      %v959 = vsel %vm685, %v952, %v958
      %961 = vst.msk [vmem:[%s295] sm:$0xff] %vm688, %v959
      %p962 = scmp.lt.s32.totalorder %s18, 1
      %s963 = scalar_select %p962, %s18, 1
      %s964 = smul.addr %s963, 8
      %s965 = scalar_lea.vmem %s7, %s964
      // Predicated region
      $region49: #{tpu_custom_call.1} parent=47 // pred_check
        %p966 = pneg %p193
      $region50: #{tpu_custom_call.1} parent=47 // pred_check_branch
        %968 = sbr.rel (%p966) target = $region52
      $region51: #{tpu_custom_call.1} parent=47 // pred_region
        _
      $region52: #{tpu_custom_call.1} parent=47 // pred_fallthru
        _
    $region48: #{tpu_custom_call.1} parent=5 // pred_fallthru
      _
    %p969 = scmp.le.s32.totalorder 2, %s13
    // Predicated region
    $region53: #{tpu_custom_call.1} parent=5 // pred_check
      %p970 = pneg %p969
    $region54: #{tpu_custom_call.1} parent=5 // pred_check_branch
      %972 = sbr.rel (%p970) target = $region56
    $region55: #{tpu_custom_call.1} parent=5 // pred_region
      %s973 = ssub.s32 %s13, 2
      // Predicated region
      $region57: #{tpu_custom_call.1} parent=55 // pred_check
        %p974 = pneg %p199
      $region58: #{tpu_custom_call.1} parent=55 // pred_check_branch
        %976 = sbr.rel (%p974) target = $region60
      $region59: #{tpu_custom_call.1} parent=55 // pred_region
        %p977 = scmp.lt.s32.totalorder %s19, 1
        %s978 = scalar_select %p977, %s19, 1
        %s979 = smul.addr %s978, 8
        %s980 = scalar_lea.vmem %s7, %s979
      $region60: #{tpu_custom_call.1} parent=55 // pred_fallthru
        _
    $region56: #{tpu_custom_call.1} parent=5 // pred_fallthru
      _
  $region6: #{tpu_custom_call.1} parent=0 // loop_footer
    %s17 = sadd.s32 1, %s13
  $region7: #{tpu_custom_call.1} parent=0 // loop_footer_branch
    %12 = sbr.rel target = $region3
  $region8: #{tpu_custom_call.1} parent=0 // loop_exit
    _

</llo_original>
